<compile_context>
chip_gen: v7x
topology: tpu7x:2x2x1
jax: 0.10.0
libtpu: 0.0.40
codegen_flags: <defaults>
</compile_context>

<pallas_src>
import jax
import jax.numpy as jnp
from jax.experimental import pallas as pl
from jax.experimental.pallas import tpu as pltpu


def sample_decoder_kernel(x_ref, w1_ref, b1_ref, w2_ref, b2_ref,
                          w3_ref, b3_ref, out_ref):
    # Matmul operands are the weights' dtype (bf16 by default, f32 optional).
    # Accumulate in f32; all elementwise math (bias add + tanh) is f32.
    wdt = w1_ref.dtype

    h = jnp.dot(x_ref[...].astype(wdt), w1_ref[...],
                preferred_element_type=jnp.float32) + b1_ref[...]
    h = jnp.tanh(h)

    h = jnp.dot(h.astype(wdt), w2_ref[...],
                preferred_element_type=jnp.float32) + b2_ref[...]
    h = jnp.tanh(h)

    h = jnp.dot(h.astype(wdt), w3_ref[...],
                preferred_element_type=jnp.float32) + b3_ref[...]
    out_ref[...] = jnp.tanh(h).astype(out_ref.dtype)


def _tpu_hints():
    """(num_tensorcores_per_device, vmem_budget_bytes) from the device kind."""
    kind = ""
    try:
        kind = jax.devices()[0].device_kind.lower()
    except Exception:
        pass
    is_v7 = "v7" in kind
    # v7x exposes 2 TensorCores per device (megacore-style grid sharding);
    # v4/v5p megacore also has 2.  v5e/v6e have a single TC.
    num_tc = 2 if (is_v7 or "v4" in kind or "v5p" in kind) else 1
    # v7x: 64 MiB physical VMEM -> leave headroom.  v5e/v6e: 128 MiB physical.
    vmem_budget = (48 << 20) if is_v7 else (100 << 20)
    return num_tc, vmem_budget


def _choose_block_m(B, num_tc, max_rows=512):
    """Row-tile size: fewest steps on single-TC chips, >=2 steps per core on
    multi-TC chips, capped so x/out tiles stay small in VMEM."""
    target_steps = 2 * num_tc if num_tc > 1 else 1
    bm = pl.cdiv(B, target_steps)
    bm = ((bm + 7) // 8) * 8          # sublane multiple
    return max(8, min(max_rows, bm))


def sample_decoder_forward(x, params, *, matmul_dtype=jnp.bfloat16,
                           block_m=None, vmem_limit_bytes=None):
    """x: (B, F) float32.  Returns (B, F) float32 = tanh-MLP forward."""
    B, F = x.shape
    H = params["w1"].shape[1]
    assert params["w1"].shape == (F, H)
    assert params["w2"].shape == (H, H)
    assert params["w3"].shape == (H, F)

    num_tc, vmem_budget = _tpu_hints()
    if vmem_limit_bytes is None:
        vmem_limit_bytes = vmem_budget
    if block_m is None:
        block_m = _choose_block_m(B, num_tc)

    # Cast matmul operands in the wrapper (so the kernel DMAs bf16 x, not f32);
    # biases stay f32 for the f32 elementwise/EUP path.
    x_in = x.astype(matmul_dtype)
    w1 = params["w1"].astype(matmul_dtype)
    w2 = params["w2"].astype(matmul_dtype)
    w3 = params["w3"].astype(matmul_dtype)
    b1 = params["b1"].astype(jnp.float32)
    b2 = params["b2"].astype(jnp.float32)
    b3 = params["b3"].astype(jnp.float32)

    # Pad ragged batches up to a multiple of block_m; slice the result back.
    B_pad = pl.cdiv(B, block_m) * block_m
    if B_pad != B:
        x_in = jnp.pad(x_in, ((0, B_pad - B), (0, 0)))
    grid = (B_pad // block_m,)

    full = lambda i: (0, 0)      # weights/biases are grid-invariant
    single = pl.Buffered(1)      # ...so don't double-buffer them in VMEM

    out = pl.pallas_call(
        sample_decoder_kernel,
        out_shape=jax.ShapeDtypeStruct((B_pad, F), jnp.float32),
        grid_spec=pltpu.PrefetchScalarGridSpec(
            num_scalar_prefetch=0,
            grid=grid,
            in_specs=[
                pl.BlockSpec((block_m, F), lambda i: (i, 0)),            # x tile
                pl.BlockSpec((F, H), full, pipeline_mode=single),        # W1
                pl.BlockSpec((1, H), full, pipeline_mode=single),        # b1
                pl.BlockSpec((H, H), full, pipeline_mode=single),        # W2
                pl.BlockSpec((1, H), full, pipeline_mode=single),        # b2
                pl.BlockSpec((H, F), full, pipeline_mode=single),        # W3
                pl.BlockSpec((1, F), full, pipeline_mode=single),        # b3
            ],
            out_specs=pl.BlockSpec((block_m, F), lambda i: (i, 0)),
        ),
        compiler_params=pltpu.CompilerParams(
            dimension_semantics=("parallel",),
            vmem_limit_bytes=vmem_limit_bytes,
        ),
    )(x_in, w1, b1, w2, b2, w3, b3)

    return out[:B] if B_pad != B else out


def init_params(key, feature_size, hidden_size):
    """nn.Linear-style init (U(-1/sqrt(fan_in), +1/sqrt(fan_in))), weights
    pre-transposed to [in, out]."""
    ks = jax.random.split(key, 6)

    def lin(kw, kb, fan_in, fan_out):
        bound = 1.0 / jnp.sqrt(fan_in)
        w = jax.random.uniform(kw, (fan_in, fan_out), jnp.float32, -bound, bound)
        b = jax.random.uniform(kb, (1, fan_out), jnp.float32, -bound, bound)
        return w, b

    w1, b1 = lin(ks[0], ks[1], feature_size, hidden_size)
    w2, b2 = lin(ks[2], ks[3], hidden_size, hidden_size)
    w3, b3 = lin(ks[4], ks[5], hidden_size, feature_size)
    return {"w1": w1, "b1": b1, "w2": w2, "b2": b2, "w3": w3, "b3": b3}


def reference_forward(x, params):
    h = jnp.tanh(x @ params["w1"] + params["b1"])
    h = jnp.tanh(h @ params["w2"] + params["b2"])
    return jnp.tanh(h @ params["w3"] + params["b3"])


if __name__ == "__main__":
    key = jax.random.PRNGKey(0)
    k_param, k_x = jax.random.split(key)

    # Lane-filled dims (multiples of 128); B=256 gives 1 step on single-TC
    # chips and 4 steps (2 per core) on 2-TC chips via the heuristic.
    B, F, H = 256, 128, 128
    params = init_params(k_param, F, H)
    x = jax.random.normal(k_x, (B, F), dtype=jnp.float32)
    ref = reference_forward(x, params)

    # Default path: bf16 matmul operands, f32 accumulation / bias / tanh / out.
    out = jax.block_until_ready(sample_decoder_forward(x, params))
    assert out.shape == (B, F)
    assert out.dtype == jnp.float32
    assert jnp.allclose(out, ref, atol=5e-2, rtol=5e-2)

    # Full-f32 path (bit-comparable to the reference).
    out_f32 = jax.block_until_ready(
        sample_decoder_forward(x, params, matmul_dtype=jnp.float32))
    assert jnp.allclose(out_f32, ref, atol=1e-5, rtol=1e-5)

    # Ragged batch exercises the pad-to-block / slice-back tail handling.
    x_r = x[:200]
    out_r = jax.block_until_ready(sample_decoder_forward(x_r, params))
    assert out_r.shape == (200, F)
    assert jnp.allclose(out_r, ref[:200], atol=5e-2, rtol=5e-2)

    print("KERNEL_OK")
</pallas_src>

<mosaic_0001>
module attributes {stable_mosaic.version = 11 : i64} {
  func.func @sample_decoder_kernel(%arg0: i32, %arg1: memref<256x128xbf16, #tpu.memory_space<vmem>>, %arg2: memref<128x128xbf16, #tpu.memory_space<vmem>>, %arg3: memref<1x128xf32, #tpu.memory_space<vmem>>, %arg4: memref<128x128xbf16, #tpu.memory_space<vmem>>, %arg5: memref<1x128xf32, #tpu.memory_space<vmem>>, %arg6: memref<128x128xbf16, #tpu.memory_space<vmem>>, %arg7: memref<1x128xf32, #tpu.memory_space<vmem>>, %arg8: memref<256x128xf32, #tpu.memory_space<vmem>>) attributes {dimension_semantics = [#tpu.dimension_semantics<parallel>], iteration_bounds = array<i64: 1>, scalar_prefetch = 0 : i64, scratch_operands = 0 : i64, tpu.core_type = #tpu.core_type<tc>, window_params = [{transform_indices = @transform_0, window_bounds = array<i64: 256, 128>}, {pipeline_mode = #tpu.pipeline_mode<synchronous>, transform_indices = @transform_1, window_bounds = array<i64: 128, 128>}, {pipeline_mode = #tpu.pipeline_mode<synchronous>, transform_indices = @transform_2, window_bounds = array<i64: 1, 128>}, {pipeline_mode = #tpu.pipeline_mode<synchronous>, transform_indices = @transform_3, window_bounds = array<i64: 128, 128>}, {pipeline_mode = #tpu.pipeline_mode<synchronous>, transform_indices = @transform_4, window_bounds = array<i64: 1, 128>}, {pipeline_mode = #tpu.pipeline_mode<synchronous>, transform_indices = @transform_5, window_bounds = array<i64: 128, 128>}, {pipeline_mode = #tpu.pipeline_mode<synchronous>, transform_indices = @transform_6, window_bounds = array<i64: 1, 128>}, {transform_indices = @transform_7, window_bounds = array<i64: 256, 128>}]} {
    %c0 = arith.constant 0 : index
    %c0_0 = arith.constant 0 : index
    %0 = vector.load %arg1[%c0, %c0_0] : memref<256x128xbf16, #tpu.memory_space<vmem>>, vector<256x128xbf16>
    %c0_1 = arith.constant 0 : index
    %c0_2 = arith.constant 0 : index
    %1 = vector.load %arg2[%c0_1, %c0_2] : memref<128x128xbf16, #tpu.memory_space<vmem>>, vector<128x128xbf16>
    %cst = arith.constant dense<0.000000e+00> : vector<256x128xf32>
    %2 = tpu.matmul %0, %1, %cst {dimension_numbers = #tpu.dot_dimension_numbers<[1], [0], [0], [1], [0, 0, 1, 1], [], []>} : vector<256x128xbf16>, vector<128x128xbf16>, vector<256x128xf32> -> vector<256x128xf32>
    %c0_3 = arith.constant 0 : index
    %c0_4 = arith.constant 0 : index
    %3 = vector.load %arg3[%c0_3, %c0_4] : memref<1x128xf32, #tpu.memory_space<vmem>>, vector<1x128xf32>
    %4 = vector.broadcast %3 : vector<1x128xf32> to vector<256x128xf32>
    %5 = arith.addf %2, %4 : vector<256x128xf32>
    %6 = math.tanh %5 : vector<256x128xf32>
    %7 = arith.truncf %6 : vector<256x128xf32> to vector<256x128xbf16>
    %c0_5 = arith.constant 0 : index
    %c0_6 = arith.constant 0 : index
    %8 = vector.load %arg4[%c0_5, %c0_6] : memref<128x128xbf16, #tpu.memory_space<vmem>>, vector<128x128xbf16>
    %cst_7 = arith.constant dense<0.000000e+00> : vector<256x128xf32>
    %9 = tpu.matmul %7, %8, %cst_7 {dimension_numbers = #tpu.dot_dimension_numbers<[1], [0], [0], [1], [0, 0, 1, 1], [], []>} : vector<256x128xbf16>, vector<128x128xbf16>, vector<256x128xf32> -> vector<256x128xf32>
    %c0_8 = arith.constant 0 : index
    %c0_9 = arith.constant 0 : index
    %10 = vector.load %arg5[%c0_8, %c0_9] : memref<1x128xf32, #tpu.memory_space<vmem>>, vector<1x128xf32>
    %11 = vector.broadcast %10 : vector<1x128xf32> to vector<256x128xf32>
    %12 = arith.addf %9, %11 : vector<256x128xf32>
    %13 = math.tanh %12 : vector<256x128xf32>
    %14 = arith.truncf %13 : vector<256x128xf32> to vector<256x128xbf16>
    %c0_10 = arith.constant 0 : index
    %c0_11 = arith.constant 0 : index
    %15 = vector.load %arg6[%c0_10, %c0_11] : memref<128x128xbf16, #tpu.memory_space<vmem>>, vector<128x128xbf16>
    %cst_12 = arith.constant dense<0.000000e+00> : vector<256x128xf32>
    %16 = tpu.matmul %14, %15, %cst_12 {dimension_numbers = #tpu.dot_dimension_numbers<[1], [0], [0], [1], [0, 0, 1, 1], [], []>} : vector<256x128xbf16>, vector<128x128xbf16>, vector<256x128xf32> -> vector<256x128xf32>
    %c0_13 = arith.constant 0 : index
    %c0_14 = arith.constant 0 : index
    %17 = vector.load %arg7[%c0_13, %c0_14] : memref<1x128xf32, #tpu.memory_space<vmem>>, vector<1x128xf32>
    %18 = vector.broadcast %17 : vector<1x128xf32> to vector<256x128xf32>
    %19 = arith.addf %16, %18 : vector<256x128xf32>
    %20 = math.tanh %19 : vector<256x128xf32>
    %c0_15 = arith.constant 0 : index
    %c0_16 = arith.constant 0 : index
    %21 = vector.load %arg8[%c0_15, %c0_16] : memref<256x128xf32, #tpu.memory_space<vmem>>, vector<256x128xf32>
    tpu.vector_store %arg8[%c0_15, %c0_16], %20 {strides = array<i32>} : memref<256x128xf32, #tpu.memory_space<vmem>>, vector<256x128xf32>,
    return
  }
  func.func @transform_0(%arg0: i32) -> (i32, i32) {
    %c0_i32 = arith.constant 0 : i32
    %c0_i32_0 = arith.constant 0 : i32
    return %arg0, %c0_i32 : i32, i32
  }
  func.func @transform_1(%arg0: i32) -> (i32, i32) {
    %c0_i32 = arith.constant 0 : i32
    %c0_i32_0 = arith.constant 0 : i32
    %c0_i32_1 = arith.constant 0 : i32
    return %c0_i32, %c0_i32_0 : i32, i32
  }
  func.func @transform_2(%arg0: i32) -> (i32, i32) {
    %c0_i32 = arith.constant 0 : i32
    %c0_i32_0 = arith.constant 0 : i32
    %c0_i32_1 = arith.constant 0 : i32
    return %c0_i32, %c0_i32_0 : i32, i32
  }
  func.func @transform_3(%arg0: i32) -> (i32, i32) {
    %c0_i32 = arith.constant 0 : i32
    %c0_i32_0 = arith.constant 0 : i32
    %c0_i32_1 = arith.constant 0 : i32
    return %c0_i32, %c0_i32_0 : i32, i32
  }
  func.func @transform_4(%arg0: i32) -> (i32, i32) {
    %c0_i32 = arith.constant 0 : i32
    %c0_i32_0 = arith.constant 0 : i32
    %c0_i32_1 = arith.constant 0 : i32
    return %c0_i32, %c0_i32_0 : i32, i32
  }
  func.func @transform_5(%arg0: i32) -> (i32, i32) {
    %c0_i32 = arith.constant 0 : i32
    %c0_i32_0 = arith.constant 0 : i32
    %c0_i32_1 = arith.constant 0 : i32
    return %c0_i32, %c0_i32_0 : i32, i32
  }
  func.func @transform_6(%arg0: i32) -> (i32, i32) {
    %c0_i32 = arith.constant 0 : i32
    %c0_i32_0 = arith.constant 0 : i32
    %c0_i32_1 = arith.constant 0 : i32
    return %c0_i32, %c0_i32_0 : i32, i32
  }
  func.func @transform_7(%arg0: i32) -> (i32, i32) {
    %c0_i32 = arith.constant 0 : i32
    %c0_i32_0 = arith.constant 0 : i32
    return %arg0, %c0_i32 : i32, i32
  }
}

</mosaic_0001>

<llo_original>
// kernel: tpu_custom_call.1
$region0: #{tpu_custom_call.1}
  #allocation0 [shape = 'u32[]', space=smem, size = 0x4, offset = 0x4, fixed_abs, tag = 'smem constant byte address 0x4 - core index']
  #allocation1 [shape = 'u32[144,128]{1,0:T(1,128)}', space=vmem, size = 0x12000, scoped, tag = 'internal scratch']
  %s0 = inlined_call_operand.hbm [shape: bf16[256,128], index: 0, kind: input, shape index: {}]
  %s1 = inlined_call_operand.hbm [shape: bf16[128,128], index: 1, kind: input, shape index: {}]
  %s2 = inlined_call_operand.hbm [shape: f32[1,128], index: 2, kind: input, shape index: {}]
  %s3 = inlined_call_operand.hbm [shape: bf16[128,128], index: 3, kind: input, shape index: {}]
  %s4 = inlined_call_operand.hbm [shape: f32[1,128], index: 4, kind: input, shape index: {}]
  %s5 = inlined_call_operand.hbm [shape: bf16[128,128], index: 5, kind: input, shape index: {}]
  %s6 = inlined_call_operand.hbm [shape: f32[1,128], index: 6, kind: input, shape index: {}]
  %s7 = inlined_call_operand.hbm [shape: f32[256,128], index: 7, kind: output, shape index: {}]
  %s8 = sld [smem:[#allocation0]]
  $region66: #{tpu_custom_call.1} parent=0
    _
  %s10 = ssub.s32 1, %s8
  %s11 = scalar_select 0, %s10, %s8
  $region1: #{tpu_custom_call.1} parent=0
    #allocation2 [shape = 'u8[65536]{0}', space=vmem, size = 0x10000, scoped, tag = 'input window, operand 0, single buffered']
    #allocation3 [shape = 's32[1]{0}', space=sflag, size = 0x4, scoped, tag = 'scoped memory for tpu_custom_call.1']
    #allocation4 [shape = 's32[1]{0}', space=sflag, size = 0x4, scoped, tag = 'scoped memory for tpu_custom_call.1']
    #allocation5 [shape = 'u8[32768]{0}', space=vmem, size = 0x8000, scoped, tag = 'input window, operand 1, single buffered']
    #allocation6 [shape = 's32[1]{0}', space=sflag, size = 0x4, scoped, tag = 'scoped memory for tpu_custom_call.1']
    #allocation7 [shape = 'u8[512]{0}', space=vmem, size = 0x400, scoped, tag = 'input window, operand 2, single buffered']
    #allocation8 [shape = 'u8[32768]{0}', space=vmem, size = 0x8000, scoped, tag = 'input window, operand 3, single buffered']
    #allocation9 [shape = 's32[1]{0}', space=sflag, size = 0x4, scoped, tag = 'scoped memory for tpu_custom_call.1']
    #allocation10 [shape = 'u8[512]{0}', space=vmem, size = 0x400, scoped, tag = 'input window, operand 4, single buffered']
    #allocation11 [shape = 'u8[32768]{0}', space=vmem, size = 0x8000, scoped, tag = 'input window, operand 5, single buffered']
    #allocation12 [shape = 's32[1]{0}', space=sflag, size = 0x4, scoped, tag = 'scoped memory for tpu_custom_call.1']
    #allocation13 [shape = 'u8[512]{0}', space=vmem, size = 0x400, scoped, tag = 'input window, operand 6, single buffered']
    #allocation14 [shape = 'u8[131072]{0}', space=vmem, size = 0x20000, scoped, tag = 'output window, operand 0, single buffered']
    %12 = vsyncpa [#allocation3], 0
    %13 = vsyncpa [#allocation6], 0
    %14 = vsyncpa [#allocation9], 0
    %15 = vsyncpa [#allocation12], 0
    %16 = vsyncpa [#allocation4], 0
    // Predicated region
    $region2: #{tpu_custom_call.1} parent=1 // pred_check
      _
    $region3: #{tpu_custom_call.1} parent=1 // pred_check_branch
      %18 = sbr.rel (0) target = $region5
    $region4: #{tpu_custom_call.1} parent=1 // pred_region
      %s20 = ssub.s32 2048, 2048
      %21 = vsyncadd [#allocation3], %s20
      %s22 = sshll.u32 [#allocation2], 4
      %s23 = int_to_ptr.vmem [resolvable:$true] %s22
      %28 = dma.hbm_to_vmem [thread:$0]  %s0, 2048, %s23, [#allocation3], 64, 64, 4
    $region5: #{tpu_custom_call.1} parent=1 // pred_fallthru
      _
    // Predicated region
    $region6: #{tpu_custom_call.1} parent=1 // pred_check
      _
    $region7: #{tpu_custom_call.1} parent=1 // pred_check_branch
      %30 = sbr.rel (0) target = $region9
    $region8: #{tpu_custom_call.1} parent=1 // pred_region
      %s32 = ssub.s32 1024, 1024
      %33 = vsyncadd [#allocation6], %s32
      %s34 = sshll.u32 [#allocation5], 4
      %s35 = int_to_ptr.vmem [resolvable:$true] %s34
      %40 = dma.hbm_to_vmem [thread:$0]  %s1, 1024, %s35, [#allocation6], 64, 64, 4
    $region9: #{tpu_custom_call.1} parent=1 // pred_fallthru
      _
    // Predicated region
    $region10: #{tpu_custom_call.1} parent=1 // pred_check
      _
    $region11: #{tpu_custom_call.1} parent=1 // pred_check_branch
      %42 = sbr.rel (0) target = $region13
    $region12: #{tpu_custom_call.1} parent=1 // pred_region
      %s44 = ssub.s32 16, 16
      %45 = vsyncadd [#allocation6], %s44
      %s47 = sshll.u32 [#allocation7], 4
      %s48 = int_to_ptr.vmem [resolvable:$true] %s47
      %50 = dma.hbm_to_vmem [thread:$0]  %s2, 16, %s48, [#allocation6]
    $region13: #{tpu_custom_call.1} parent=1 // pred_fallthru
      _
    // Predicated region
    $region14: #{tpu_custom_call.1} parent=1 // pred_check
      _
    $region15: #{tpu_custom_call.1} parent=1 // pred_check_branch
      %52 = sbr.rel (0) target = $region17
    $region16: #{tpu_custom_call.1} parent=1 // pred_region
      %s54 = ssub.s32 1024, 1024
      %55 = vsyncadd [#allocation9], %s54
      %s56 = sshll.u32 [#allocation8], 4
      %s57 = int_to_ptr.vmem [resolvable:$true] %s56
      %62 = dma.hbm_to_vmem [thread:$0]  %s3, 1024, %s57, [#allocation9], 64, 64, 4
    $region17: #{tpu_custom_call.1} parent=1 // pred_fallthru
      _
    // Predicated region
    $region18: #{tpu_custom_call.1} parent=1 // pred_check
      _
    $region19: #{tpu_custom_call.1} parent=1 // pred_check_branch
      %64 = sbr.rel (0) target = $region21
    $region20: #{tpu_custom_call.1} parent=1 // pred_region
      %s66 = ssub.s32 16, 16
      %67 = vsyncadd [#allocation9], %s66
      %s69 = sshll.u32 [#allocation10], 4
      %s70 = int_to_ptr.vmem [resolvable:$true] %s69
      %72 = dma.hbm_to_vmem [thread:$0]  %s4, 16, %s70, [#allocation9]
    $region21: #{tpu_custom_call.1} parent=1 // pred_fallthru
      _
    // Predicated region
    $region22: #{tpu_custom_call.1} parent=1 // pred_check
      _
    $region23: #{tpu_custom_call.1} parent=1 // pred_check_branch
      %74 = sbr.rel (0) target = $region25
    $region24: #{tpu_custom_call.1} parent=1 // pred_region
      %s76 = ssub.s32 1024, 1024
      %77 = vsyncadd [#allocation12], %s76
      %s78 = sshll.u32 [#allocation11], 4
      %s79 = int_to_ptr.vmem [resolvable:$true] %s78
      %84 = dma.hbm_to_vmem [thread:$0]  %s5, 1024, %s79, [#allocation12], 64, 64, 4
    $region25: #{tpu_custom_call.1} parent=1 // pred_fallthru
      _
    // Predicated region
    $region26: #{tpu_custom_call.1} parent=1 // pred_check
      _
    $region27: #{tpu_custom_call.1} parent=1 // pred_check_branch
      %86 = sbr.rel (0) target = $region29
    $region28: #{tpu_custom_call.1} parent=1 // pred_region
      %s88 = ssub.s32 16, 16
      %89 = vsyncadd [#allocation12], %s88
      %s91 = sshll.u32 [#allocation13], 4
      %s92 = int_to_ptr.vmem [resolvable:$true] %s91
      %94 = dma.hbm_to_vmem [thread:$0]  %s6, 16, %s92, [#allocation12]
    $region29: #{tpu_custom_call.1} parent=1 // pred_fallthru
      _
    // Predicated region
    $region30: #{tpu_custom_call.1} parent=1 // pred_check
      _
    $region31: #{tpu_custom_call.1} parent=1 // pred_check_branch
      %96 = sbr.rel (0) target = $region33
    $region32: #{tpu_custom_call.1} parent=1 // pred_region
      %97 = dma.done [#allocation3], 2048
    $region33: #{tpu_custom_call.1} parent=1 // pred_fallthru
      _
    // Predicated region
    $region34: #{tpu_custom_call.1} parent=1 // pred_check
      _
    $region35: #{tpu_custom_call.1} parent=1 // pred_check_branch
      %99 = sbr.rel (0) target = $region37
    $region36: #{tpu_custom_call.1} parent=1 // pred_region
      %100 = dma.done [#allocation6], 1024
    $region37: #{tpu_custom_call.1} parent=1 // pred_fallthru
      _
    // Predicated region
    $region38: #{tpu_custom_call.1} parent=1 // pred_check
      _
    $region39: #{tpu_custom_call.1} parent=1 // pred_check_branch
      %102 = sbr.rel (0) target = $region41
    $region40: #{tpu_custom_call.1} parent=1 // pred_region
      %103 = dma.done [#allocation6], 16
    $region41: #{tpu_custom_call.1} parent=1 // pred_fallthru
      _
    // Predicated region
    $region42: #{tpu_custom_call.1} parent=1 // pred_check
      _
    $region43: #{tpu_custom_call.1} parent=1 // pred_check_branch
      %105 = sbr.rel (0) target = $region45
    $region44: #{tpu_custom_call.1} parent=1 // pred_region
      %106 = dma.done [#allocation9], 1024
    $region45: #{tpu_custom_call.1} parent=1 // pred_fallthru
      _
    // Predicated region
    $region46: #{tpu_custom_call.1} parent=1 // pred_check
      _
    $region47: #{tpu_custom_call.1} parent=1 // pred_check_branch
      %108 = sbr.rel (0) target = $region49
    $region48: #{tpu_custom_call.1} parent=1 // pred_region
      %109 = dma.done [#allocation9], 16
    $region49: #{tpu_custom_call.1} parent=1 // pred_fallthru
      _
    // Predicated region
    $region50: #{tpu_custom_call.1} parent=1 // pred_check
      _
    $region51: #{tpu_custom_call.1} parent=1 // pred_check_branch
      %111 = sbr.rel (0) target = $region53
    $region52: #{tpu_custom_call.1} parent=1 // pred_region
      %112 = dma.done [#allocation12], 1024
    $region53: #{tpu_custom_call.1} parent=1 // pred_fallthru
      _
    // Predicated region
    $region54: #{tpu_custom_call.1} parent=1 // pred_check
      _
    $region55: #{tpu_custom_call.1} parent=1 // pred_check_branch
      %114 = sbr.rel (0) target = $region57
    $region56: #{tpu_custom_call.1} parent=1 // pred_region
      %115 = dma.done [#allocation12], 16
    $region57: #{tpu_custom_call.1} parent=1 // pred_fallthru
      _
    %v117 = vld [vmem:[#allocation2] sm:$0xf]
    %v118 = vld [vmem:[#allocation2 + $0x4] sm:$0xf]
    %v119 = vld [vmem:[#allocation2 + $0x8] sm:$0xf]
    %v120 = vld [vmem:[#allocation2 + $0xc] sm:$0xf]
    %v121 = vld [vmem:[#allocation2 + $0x10] sm:$0xf]
    %v122 = vld [vmem:[#allocation2 + $0x14] sm:$0xf]
    %v123 = vld [vmem:[#allocation2 + $0x18] sm:$0xf]
    %v124 = vld [vmem:[#allocation2 + $0x1c] sm:$0xf]
    %v125 = vld [vmem:[#allocation2 + $0x20] sm:$0xf]
    %v126 = vld [vmem:[#allocation2 + $0x24] sm:$0xf]
    %v127 = vld [vmem:[#allocation2 + $0x28] sm:$0xf]
    %v128 = vld [vmem:[#allocation2 + $0x2c] sm:$0xf]
    %v129 = vld [vmem:[#allocation2 + $0x30] sm:$0xf]
    %v130 = vld [vmem:[#allocation2 + $0x34] sm:$0xf]
    %v131 = vld [vmem:[#allocation2 + $0x38] sm:$0xf]
    %v132 = vld [vmem:[#allocation2 + $0x3c] sm:$0xf]
    %v133 = vld [vmem:[#allocation2 + $0x40] sm:$0xf]
    %v134 = vld [vmem:[#allocation2 + $0x44] sm:$0xf]
    %v135 = vld [vmem:[#allocation2 + $0x48] sm:$0xf]
    %v136 = vld [vmem:[#allocation2 + $0x4c] sm:$0xf]
    %v137 = vld [vmem:[#allocation2 + $0x50] sm:$0xf]
    %v138 = vld [vmem:[#allocation2 + $0x54] sm:$0xf]
    %v139 = vld [vmem:[#allocation2 + $0x58] sm:$0xf]
    %v140 = vld [vmem:[#allocation2 + $0x5c] sm:$0xf]
    %v141 = vld [vmem:[#allocation2 + $0x60] sm:$0xf]
    %v142 = vld [vmem:[#allocation2 + $0x64] sm:$0xf]
    %v143 = vld [vmem:[#allocation2 + $0x68] sm:$0xf]
    %v144 = vld [vmem:[#allocation2 + $0x6c] sm:$0xf]
    %v145 = vld [vmem:[#allocation2 + $0x70] sm:$0xf]
    %v146 = vld [vmem:[#allocation2 + $0x74] sm:$0xf]
    %v147 = vld [vmem:[#allocation2 + $0x78] sm:$0xf]
    %v148 = vld [vmem:[#allocation2 + $0x7c] sm:$0xf]
    %v149 = vld [vmem:[#allocation5] sm:$0xf]
    %v150 = vld [vmem:[#allocation5 + $0x4] sm:$0xf]
    %v151 = vld [vmem:[#allocation5 + $0x8] sm:$0xf]
    %v152 = vld [vmem:[#allocation5 + $0xc] sm:$0xf]
    %v153 = vld [vmem:[#allocation5 + $0x10] sm:$0xf]
    %v154 = vld [vmem:[#allocation5 + $0x14] sm:$0xf]
    %v155 = vld [vmem:[#allocation5 + $0x18] sm:$0xf]
    %v156 = vld [vmem:[#allocation5 + $0x1c] sm:$0xf]
    %v157 = vld [vmem:[#allocation5 + $0x20] sm:$0xf]
    %v158 = vld [vmem:[#allocation5 + $0x24] sm:$0xf]
    %v159 = vld [vmem:[#allocation5 + $0x28] sm:$0xf]
    %v160 = vld [vmem:[#allocation5 + $0x2c] sm:$0xf]
    %v161 = vld [vmem:[#allocation5 + $0x30] sm:$0xf]
    %v162 = vld [vmem:[#allocation5 + $0x34] sm:$0xf]
    %v163 = vld [vmem:[#allocation5 + $0x38] sm:$0xf]
    %v164 = vld [vmem:[#allocation5 + $0x3c] sm:$0xf]
    %v165 = vld [vmem:[#allocation7] sm:$0x1]
    %v167 = vlaneseq
    %v168 = vshrl.u32 %v167, 7
    %v169 = vsub.s32 0, %v168
    %v170 = vrot.slane %v165, %v169
    %v204 = vunpack.c.l.b16 %v117
    %v205 = vunpack.c.l.b16 %v118
    %v206 = vunpack.c.l.b16 %v119
    %v207 = vunpack.c.l.b16 %v120
    %v208 = vunpack.c.l.b16 %v121
    %v209 = vunpack.c.l.b16 %v122
    %v210 = vunpack.c.l.b16 %v123
    %v211 = vunpack.c.l.b16 %v124
    %v212 = vunpack.c.l.b16 %v125
    %v213 = vunpack.c.l.b16 %v126
    %v214 = vunpack.c.l.b16 %v127
    %v215 = vunpack.c.l.b16 %v128
    %v216 = vunpack.c.l.b16 %v129
    %v217 = vunpack.c.l.b16 %v130
    %v218 = vunpack.c.l.b16 %v131
    %v219 = vunpack.c.l.b16 %v132
    %v220 = vunpack.c.l.b16 %v133
    %v221 = vunpack.c.l.b16 %v134
    %v222 = vunpack.c.l.b16 %v135
    %v223 = vunpack.c.l.b16 %v136
    %v224 = vunpack.c.l.b16 %v137
    %v225 = vunpack.c.l.b16 %v138
    %v226 = vunpack.c.l.b16 %v139
    %v227 = vunpack.c.l.b16 %v140
    %v228 = vunpack.c.l.b16 %v141
    %v229 = vunpack.c.l.b16 %v142
    %v230 = vunpack.c.l.b16 %v143
    %v231 = vunpack.c.l.b16 %v144
    %v232 = vunpack.c.l.b16 %v145
    %v233 = vunpack.c.l.b16 %v146
    %v234 = vunpack.c.l.b16 %v147
    %v235 = vunpack.c.l.b16 %v148
    %v236 = vpack.c.b16 %v205, %v204
    %v237 = vpack.c.b16 %v207, %v206
    %v238 = vpack.c.b16 %v209, %v208
    %v239 = vpack.c.b16 %v211, %v210
    %v240 = vpack.c.b16 %v213, %v212
    %v241 = vpack.c.b16 %v215, %v214
    %v242 = vpack.c.b16 %v217, %v216
    %v243 = vpack.c.b16 %v219, %v218
    %v244 = vpack.c.b16 %v221, %v220
    %v245 = vpack.c.b16 %v223, %v222
    %v246 = vpack.c.b16 %v225, %v224
    %v247 = vpack.c.b16 %v227, %v226
    %v248 = vpack.c.b16 %v229, %v228
    %v249 = vpack.c.b16 %v231, %v230
    %v250 = vpack.c.b16 %v233, %v232
    %v251 = vpack.c.b16 %v235, %v234
    %v284 = vunpack.c.l.b16 %v149
    %v285 = vunpack.c.l.b16 %v150
    %v286 = vunpack.c.l.b16 %v151
    %v287 = vunpack.c.l.b16 %v152
    %v288 = vunpack.c.l.b16 %v153
    %v289 = vunpack.c.l.b16 %v154
    %v290 = vunpack.c.l.b16 %v155
    %v291 = vunpack.c.l.b16 %v156
    %v292 = vunpack.c.l.b16 %v157
    %v293 = vunpack.c.l.b16 %v158
    %v294 = vunpack.c.l.b16 %v159
    %v295 = vunpack.c.l.b16 %v160
    %v296 = vunpack.c.l.b16 %v161
    %v297 = vunpack.c.l.b16 %v162
    %v298 = vunpack.c.l.b16 %v163
    %v299 = vunpack.c.l.b16 %v164
    %v300 = vpack.c.b16 %v285, %v284
    %v301 = vpack.c.b16 %v287, %v286
    %v302 = vpack.c.b16 %v289, %v288
    %v303 = vpack.c.b16 %v291, %v290
    %v304 = vpack.c.b16 %v293, %v292
    %v305 = vpack.c.b16 %v295, %v294
    %v306 = vpack.c.b16 %v297, %v296
    %v307 = vpack.c.b16 %v299, %v298
    %316 = vmatprep.subr.bf16.mxu0 0
    %317 = vmatpush1.bf16.msra.mxu0 %v300
    %318 = vmatprep.subr.bf16.mxu0 0
    %319 = vmatpush1.bf16.msra.mxu0 %v301
    %320 = vmatprep.subr.bf16.mxu0 0
    %321 = vmatpush1.bf16.msra.mxu0 %v302
    %322 = vmatprep.subr.bf16.mxu0 0
    %323 = vmatpush1.bf16.msra.mxu0 %v303
    %324 = vmatprep.subr.bf16.mxu0 0
    %325 = vmatpush1.bf16.msra.mxu0 %v304
    %326 = vmatprep.subr.bf16.mxu0 0
    %327 = vmatpush1.bf16.msra.mxu0 %v305
    %328 = vmatprep.subr.bf16.mxu0 0
    %329 = vmatpush1.bf16.msra.mxu0 %v306
    %330 = vmatprep.subr.bf16.mxu0 0
    %331 = vmatpush1.bf16.msra.mxu0 %v307
    %332 = vmatprep.subr.bf16.mxu0 0
    %333 = vmatpush1.bf16.msra.mxu0 0
    %334 = vmatprep.subr.bf16.mxu0 0
    %335 = vmatpush1.bf16.msra.mxu0 0
    %336 = vmatprep.subr.bf16.mxu0 0
    %337 = vmatpush1.bf16.msra.mxu0 0
    %338 = vmatprep.subr.bf16.mxu0 0
    %339 = vmatpush1.bf16.msra.mxu0 0
    %340 = vmatprep.subr.bf16.mxu0 0
    %341 = vmatpush1.bf16.msra.mxu0 0
    %342 = vmatprep.subr.bf16.mxu0 0
    %343 = vmatpush1.bf16.msra.mxu0 0
    %344 = vmatprep.subr.bf16.mxu0 0
    %345 = vmatpush1.bf16.msra.mxu0 0
    %346 = vmatprep.subr.bf16.mxu0 0
    %347 = vmatpush1.bf16.msra.mxu0 0
    %348 = vmatprep.mubr.bf16.mxu0 0
    %349 = vmatmul.mubr.bf16.gmra.mrb[0].mxu0 %v236
    %v350 = vpop.f32.mrb[0].mxu0
    %v351 = vadd.f32 %v170, %v350
    %v352 = vpop.f32.mrb[0].mxu0
    %v353 = vpop.f32.mrb[0].mxu0
    %v354 = vadd.f32 %v170, %v353
    %v355 = vpop.f32.mrb[0].mxu0
    %356 = vmatprep.mubr.bf16.mxu0 0
    %357 = vmatmul.mubr.bf16.gmra.mrb[0].mxu0 %v237
    %v358 = vpop.f32.mrb[0].mxu0
    %v359 = vadd.f32 %v170, %v358
    %v360 = vpop.f32.mrb[0].mxu0
    %v361 = vpop.f32.mrb[0].mxu0
    %v362 = vadd.f32 %v170, %v361
    %v363 = vpop.f32.mrb[0].mxu0
    %364 = vmatprep.mubr.bf16.mxu0 0
    %365 = vmatmul.mubr.bf16.gmra.mrb[0].mxu0 %v238
    %v366 = vpop.f32.mrb[0].mxu0
    %v367 = vadd.f32 %v170, %v366
    %v368 = vpop.f32.mrb[0].mxu0
    %v369 = vpop.f32.mrb[0].mxu0
    %v370 = vadd.f32 %v170, %v369
    %v371 = vpop.f32.mrb[0].mxu0
    %372 = vmatprep.mubr.bf16.mxu0 0
    %373 = vmatmul.mubr.bf16.gmra.mrb[0].mxu0 %v239
    %v374 = vpop.f32.mrb[0].mxu0
    %v375 = vadd.f32 %v170, %v374
    %v376 = vpop.f32.mrb[0].mxu0
    %v377 = vpop.f32.mrb[0].mxu0
    %v378 = vadd.f32 %v170, %v377
    %v379 = vpop.f32.mrb[0].mxu0
    %380 = vmatprep.mubr.bf16.mxu0 0
    %381 = vmatmul.mubr.bf16.gmra.mrb[0].mxu0 %v240
    %v382 = vpop.f32.mrb[0].mxu0
    %v383 = vadd.f32 %v170, %v382
    %v384 = vpop.f32.mrb[0].mxu0
    %v385 = vpop.f32.mrb[0].mxu0
    %v386 = vadd.f32 %v170, %v385
    %v387 = vpop.f32.mrb[0].mxu0
    %388 = vmatprep.mubr.bf16.mxu0 0
    %389 = vmatmul.mubr.bf16.gmra.mrb[0].mxu0 %v241
    %v390 = vpop.f32.mrb[0].mxu0
    %v391 = vadd.f32 %v170, %v390
    %v392 = vpop.f32.mrb[0].mxu0
    %v393 = vpop.f32.mrb[0].mxu0
    %v394 = vadd.f32 %v170, %v393
    %v395 = vpop.f32.mrb[0].mxu0
    %396 = vmatprep.mubr.bf16.mxu0 0
    %397 = vmatmul.mubr.bf16.gmra.mrb[0].mxu0 %v242
    %v398 = vpop.f32.mrb[0].mxu0
    %v399 = vadd.f32 %v170, %v398
    %v400 = vpop.f32.mrb[0].mxu0
    %v401 = vpop.f32.mrb[0].mxu0
    %v402 = vadd.f32 %v170, %v401
    %v403 = vpop.f32.mrb[0].mxu0
    %404 = vmatprep.mubr.bf16.mxu0 0
    %405 = vmatmul.mubr.bf16.gmra.mrb[0].mxu0 %v243
    %v406 = vpop.f32.mrb[0].mxu0
    %v407 = vadd.f32 %v170, %v406
    %v408 = vpop.f32.mrb[0].mxu0
    %v409 = vpop.f32.mrb[0].mxu0
    %v410 = vadd.f32 %v170, %v409
    %v411 = vpop.f32.mrb[0].mxu0
    %412 = vmatprep.mubr.bf16.mxu0 0
    %413 = vmatmul.mubr.bf16.gmra.mrb[0].mxu0 %v244
    %v414 = vpop.f32.mrb[0].mxu0
    %v415 = vadd.f32 %v170, %v414
    %v416 = vpop.f32.mrb[0].mxu0
    %v417 = vpop.f32.mrb[0].mxu0
    %v418 = vadd.f32 %v170, %v417
    %v419 = vpop.f32.mrb[0].mxu0
    %420 = vmatprep.mubr.bf16.mxu0 0
    %421 = vmatmul.mubr.bf16.gmra.mrb[0].mxu0 %v245
    %v422 = vpop.f32.mrb[0].mxu0
    %v423 = vadd.f32 %v170, %v422
    %v424 = vpop.f32.mrb[0].mxu0
    %v425 = vpop.f32.mrb[0].mxu0
    %v426 = vadd.f32 %v170, %v425
    %v427 = vpop.f32.mrb[0].mxu0
    %428 = vmatprep.mubr.bf16.mxu0 0
    %429 = vmatmul.mubr.bf16.gmra.mrb[0].mxu0 %v246
    %v430 = vpop.f32.mrb[0].mxu0
    %v431 = vadd.f32 %v170, %v430
    %v432 = vpop.f32.mrb[0].mxu0
    %v433 = vpop.f32.mrb[0].mxu0
    %v434 = vadd.f32 %v170, %v433
    %v435 = vpop.f32.mrb[0].mxu0
    %436 = vmatprep.mubr.bf16.mxu0 0
    %437 = vmatmul.mubr.bf16.gmra.mrb[0].mxu0 %v247
    %v438 = vpop.f32.mrb[0].mxu0
    %v439 = vadd.f32 %v170, %v438
    %v440 = vpop.f32.mrb[0].mxu0
    %v441 = vpop.f32.mrb[0].mxu0
    %v442 = vadd.f32 %v170, %v441
    %v443 = vpop.f32.mrb[0].mxu0
    %444 = vmatprep.mubr.bf16.mxu0 0
    %445 = vmatmul.mubr.bf16.gmra.mrb[0].mxu0 %v248
    %v446 = vpop.f32.mrb[0].mxu0
    %v447 = vadd.f32 %v170, %v446
    %v448 = vpop.f32.mrb[0].mxu0
    %v449 = vpop.f32.mrb[0].mxu0
    %v450 = vadd.f32 %v170, %v449
    %v451 = vpop.f32.mrb[0].mxu0
    %452 = vmatprep.mubr.bf16.mxu0 0
    %453 = vmatmul.mubr.bf16.gmra.mrb[0].mxu0 %v249
    %v454 = vpop.f32.mrb[0].mxu0
    %v455 = vadd.f32 %v170, %v454
    %v456 = vpop.f32.mrb[0].mxu0
    %v457 = vpop.f32.mrb[0].mxu0
    %v458 = vadd.f32 %v170, %v457
    %v459 = vpop.f32.mrb[0].mxu0
    %460 = vmatprep.mubr.bf16.mxu0 0
    %461 = vmatmul.mubr.bf16.gmra.mrb[0].mxu0 %v250
    %v462 = vpop.f32.mrb[0].mxu0
    %v463 = vadd.f32 %v170, %v462
    %v464 = vpop.f32.mrb[0].mxu0
    %v465 = vpop.f32.mrb[0].mxu0
    %v466 = vadd.f32 %v170, %v465
    %v467 = vpop.f32.mrb[0].mxu0
    %468 = vmatprep.mubr.bf16.mxu0 0
    %469 = vmatmul.mubr.bf16.gmra.mrb[0].mxu0 %v251
    %v470 = vpop.f32.mrb[0].mxu0
    %v471 = vadd.f32 %v170, %v470
    %v472 = vpop.f32.mrb[0].mxu0
    %v473 = vpop.f32.mrb[0].mxu0
    %v474 = vadd.f32 %v170, %v473
    %v475 = vpop.f32.mrb[0].mxu0
    %476 = vdwg.mxu0
    %v477 = vtanh.pop %v351
    %v478 = vtanh.pop %v354
    %v479 = vtanh.pop %v359
    %v480 = vtanh.pop %v362
    %v481 = vtanh.pop %v367
    %v482 = vtanh.pop %v370
    %v483 = vtanh.pop %v375
    %v484 = vtanh.pop %v378
    %v485 = vtanh.pop %v383
    %v486 = vtanh.pop %v386
    %v487 = vtanh.pop %v391
    %v488 = vtanh.pop %v394
    %v489 = vtanh.pop %v399
    %v490 = vtanh.pop %v402
    %v491 = vtanh.pop %v407
    %v492 = vtanh.pop %v410
    %v493 = vtanh.pop %v415
    %v494 = vtanh.pop %v418
    %v495 = vtanh.pop %v423
    %v496 = vtanh.pop %v426
    %v497 = vtanh.pop %v431
    %v498 = vtanh.pop %v434
    %v499 = vtanh.pop %v439
    %v500 = vtanh.pop %v442
    %v501 = vtanh.pop %v447
    %v502 = vtanh.pop %v450
    %v503 = vtanh.pop %v455
    %v504 = vtanh.pop %v458
    %v505 = vtanh.pop %v463
    %v506 = vtanh.pop %v466
    %v507 = vtanh.pop %v471
    %v508 = vtanh.pop %v474
    %v509 = vpack.c.bf16 %v478, %v477
    %v510 = vpack.c.bf16 %v480, %v479
    %v511 = vpack.c.bf16 %v482, %v481
    %v512 = vpack.c.bf16 %v484, %v483
    %v513 = vpack.c.bf16 %v486, %v485
    %v514 = vpack.c.bf16 %v488, %v487
    %v515 = vpack.c.bf16 %v490, %v489
    %v516 = vpack.c.bf16 %v492, %v491
    %v517 = vpack.c.bf16 %v494, %v493
    %v518 = vpack.c.bf16 %v496, %v495
    %v519 = vpack.c.bf16 %v498, %v497
    %v520 = vpack.c.bf16 %v500, %v499
    %v521 = vpack.c.bf16 %v502, %v501
    %v522 = vpack.c.bf16 %v504, %v503
    %v523 = vpack.c.bf16 %v506, %v505
    %v524 = vpack.c.bf16 %v508, %v507
    %v525 = vld [vmem:[#allocation8] sm:$0xf]
    %v526 = vld [vmem:[#allocation8 + $0x4] sm:$0xf]
    %v527 = vld [vmem:[#allocation8 + $0x8] sm:$0xf]
    %v528 = vld [vmem:[#allocation8 + $0xc] sm:$0xf]
    %v529 = vld [vmem:[#allocation8 + $0x10] sm:$0xf]
    %v530 = vld [vmem:[#allocation8 + $0x14] sm:$0xf]
    %v531 = vld [vmem:[#allocation8 + $0x18] sm:$0xf]
    %v532 = vld [vmem:[#allocation8 + $0x1c] sm:$0xf]
    %v533 = vld [vmem:[#allocation8 + $0x20] sm:$0xf]
    %v534 = vld [vmem:[#allocation8 + $0x24] sm:$0xf]
    %v535 = vld [vmem:[#allocation8 + $0x28] sm:$0xf]
    %v536 = vld [vmem:[#allocation8 + $0x2c] sm:$0xf]
    %v537 = vld [vmem:[#allocation8 + $0x30] sm:$0xf]
    %v538 = vld [vmem:[#allocation8 + $0x34] sm:$0xf]
    %v539 = vld [vmem:[#allocation8 + $0x38] sm:$0xf]
    %v540 = vld [vmem:[#allocation8 + $0x3c] sm:$0xf]
    %v541 = vld [vmem:[#allocation10] sm:$0x1]
    %v543 = vlaneseq
    %v544 = vshrl.u32 %v543, 7
    %v545 = vsub.s32 0, %v544
    %v546 = vrot.slane %v541, %v545
    %v564 = vunpack.c.l.b16 %v525
    %v565 = vunpack.c.l.b16 %v526
    %v566 = vunpack.c.l.b16 %v527
    %v567 = vunpack.c.l.b16 %v528
    %v568 = vunpack.c.l.b16 %v529
    %v569 = vunpack.c.l.b16 %v530
    %v570 = vunpack.c.l.b16 %v531
    %v571 = vunpack.c.l.b16 %v532
    %v572 = vunpack.c.l.b16 %v533
    %v573 = vunpack.c.l.b16 %v534
    %v574 = vunpack.c.l.b16 %v535
    %v575 = vunpack.c.l.b16 %v536
    %v576 = vunpack.c.l.b16 %v537
    %v577 = vunpack.c.l.b16 %v538
    %v578 = vunpack.c.l.b16 %v539
    %v579 = vunpack.c.l.b16 %v540
    %v580 = vpack.c.b16 %v565, %v564
    %v581 = vpack.c.b16 %v567, %v566
    %v582 = vpack.c.b16 %v569, %v568
    %v583 = vpack.c.b16 %v571, %v570
    %v584 = vpack.c.b16 %v573, %v572
    %v585 = vpack.c.b16 %v575, %v574
    %v586 = vpack.c.b16 %v577, %v576
    %v587 = vpack.c.b16 %v579, %v578
    %596 = vmatprep.subr.bf16.mxu0 0
    %597 = vmatpush1.bf16.msra.mxu0 %v580
    %598 = vmatprep.subr.bf16.mxu0 0
    %599 = vmatpush1.bf16.msra.mxu0 %v581
    %600 = vmatprep.subr.bf16.mxu0 0
    %601 = vmatpush1.bf16.msra.mxu0 %v582
    %602 = vmatprep.subr.bf16.mxu0 0
    %603 = vmatpush1.bf16.msra.mxu0 %v583
    %604 = vmatprep.subr.bf16.mxu0 0
    %605 = vmatpush1.bf16.msra.mxu0 %v584
    %606 = vmatprep.subr.bf16.mxu0 0
    %607 = vmatpush1.bf16.msra.mxu0 %v585
    %608 = vmatprep.subr.bf16.mxu0 0
    %609 = vmatpush1.bf16.msra.mxu0 %v586
    %610 = vmatprep.subr.bf16.mxu0 0
    %611 = vmatpush1.bf16.msra.mxu0 %v587
    %612 = vmatprep.subr.bf16.mxu0 0
    %613 = vmatpush1.bf16.msra.mxu0 0
    %614 = vmatprep.subr.bf16.mxu0 0
    %615 = vmatpush1.bf16.msra.mxu0 0
    %616 = vmatprep.subr.bf16.mxu0 0
    %617 = vmatpush1.bf16.msra.mxu0 0
    %618 = vmatprep.subr.bf16.mxu0 0
    %619 = vmatpush1.bf16.msra.mxu0 0
    %620 = vmatprep.subr.bf16.mxu0 0
    %621 = vmatpush1.bf16.msra.mxu0 0
    %622 = vmatprep.subr.bf16.mxu0 0
    %623 = vmatpush1.bf16.msra.mxu0 0
    %624 = vmatprep.subr.bf16.mxu0 0
    %625 = vmatpush1.bf16.msra.mxu0 0
    %626 = vmatprep.subr.bf16.mxu0 0
    %627 = vmatpush1.bf16.msra.mxu0 0
    %628 = vmatprep.mubr.bf16.mxu0 0
    %629 = vmatmul.mubr.bf16.gmra.mrb[0].mxu0 %v509
    %v630 = vpop.f32.mrb[0].mxu0
    %v631 = vadd.f32 %v546, %v630
    %v632 = vpop.f32.mrb[0].mxu0
    %v633 = vpop.f32.mrb[0].mxu0
    %v634 = vadd.f32 %v546, %v633
    %v635 = vpop.f32.mrb[0].mxu0
    %636 = vmatprep.mubr.bf16.mxu0 0
    %637 = vmatmul.mubr.bf16.gmra.mrb[0].mxu0 %v510
    %v638 = vpop.f32.mrb[0].mxu0
    %v639 = vadd.f32 %v546, %v638
    %v640 = vpop.f32.mrb[0].mxu0
    %v641 = vpop.f32.mrb[0].mxu0
    %v642 = vadd.f32 %v546, %v641
    %v643 = vpop.f32.mrb[0].mxu0
    %644 = vmatprep.mubr.bf16.mxu0 0
    %645 = vmatmul.mubr.bf16.gmra.mrb[0].mxu0 %v511
    %v646 = vpop.f32.mrb[0].mxu0
    %v647 = vadd.f32 %v546, %v646
    %v648 = vpop.f32.mrb[0].mxu0
    %v649 = vpop.f32.mrb[0].mxu0
    %v650 = vadd.f32 %v546, %v649
    %v651 = vpop.f32.mrb[0].mxu0
    %652 = vmatprep.mubr.bf16.mxu0 0
    %653 = vmatmul.mubr.bf16.gmra.mrb[0].mxu0 %v512
    %v654 = vpop.f32.mrb[0].mxu0
    %v655 = vadd.f32 %v546, %v654
    %v656 = vpop.f32.mrb[0].mxu0
    %v657 = vpop.f32.mrb[0].mxu0
    %v658 = vadd.f32 %v546, %v657
    %v659 = vpop.f32.mrb[0].mxu0
    %660 = vmatprep.mubr.bf16.mxu0 0
    %661 = vmatmul.mubr.bf16.gmra.mrb[0].mxu0 %v513
    %v662 = vpop.f32.mrb[0].mxu0
    %v663 = vadd.f32 %v546, %v662
    %v664 = vpop.f32.mrb[0].mxu0
    %v665 = vpop.f32.mrb[0].mxu0
    %v666 = vadd.f32 %v546, %v665
    %v667 = vpop.f32.mrb[0].mxu0
    %668 = vmatprep.mubr.bf16.mxu0 0
    %669 = vmatmul.mubr.bf16.gmra.mrb[0].mxu0 %v514
    %v670 = vpop.f32.mrb[0].mxu0
    %v671 = vadd.f32 %v546, %v670
    %v672 = vpop.f32.mrb[0].mxu0
    %v673 = vpop.f32.mrb[0].mxu0
    %v674 = vadd.f32 %v546, %v673
    %v675 = vpop.f32.mrb[0].mxu0
    %676 = vmatprep.mubr.bf16.mxu0 0
    %677 = vmatmul.mubr.bf16.gmra.mrb[0].mxu0 %v515
    %v678 = vpop.f32.mrb[0].mxu0
    %v679 = vadd.f32 %v546, %v678
    %v680 = vpop.f32.mrb[0].mxu0
    %v681 = vpop.f32.mrb[0].mxu0
    %v682 = vadd.f32 %v546, %v681
    %v683 = vpop.f32.mrb[0].mxu0
    %684 = vmatprep.mubr.bf16.mxu0 0
    %685 = vmatmul.mubr.bf16.gmra.mrb[0].mxu0 %v516
    %v686 = vpop.f32.mrb[0].mxu0
    %v687 = vadd.f32 %v546, %v686
    %v688 = vpop.f32.mrb[0].mxu0
    %v689 = vpop.f32.mrb[0].mxu0
    %v690 = vadd.f32 %v546, %v689
    %v691 = vpop.f32.mrb[0].mxu0
    %692 = vmatprep.mubr.bf16.mxu0 0
    %693 = vmatmul.mubr.bf16.gmra.mrb[0].mxu0 %v517
    %v694 = vpop.f32.mrb[0].mxu0
    %v695 = vadd.f32 %v546, %v694
    %v696 = vpop.f32.mrb[0].mxu0
    %v697 = vpop.f32.mrb[0].mxu0
    %v698 = vadd.f32 %v546, %v697
    %v699 = vpop.f32.mrb[0].mxu0
    %700 = vmatprep.mubr.bf16.mxu0 0
    %701 = vmatmul.mubr.bf16.gmra.mrb[0].mxu0 %v518
    %v702 = vpop.f32.mrb[0].mxu0
    %v703 = vadd.f32 %v546, %v702
    %v704 = vpop.f32.mrb[0].mxu0
    %v705 = vpop.f32.mrb[0].mxu0
    %v706 = vadd.f32 %v546, %v705
    %v707 = vpop.f32.mrb[0].mxu0
    %708 = vmatprep.mubr.bf16.mxu0 0
    %709 = vmatmul.mubr.bf16.gmra.mrb[0].mxu0 %v519
    %v710 = vpop.f32.mrb[0].mxu0
    %v711 = vadd.f32 %v546, %v710
    %v712 = vpop.f32.mrb[0].mxu0
    %v713 = vpop.f32.mrb[0].mxu0
    %v714 = vadd.f32 %v546, %v713
    %v715 = vpop.f32.mrb[0].mxu0
    %716 = vmatprep.mubr.bf16.mxu0 0
    %717 = vmatmul.mubr.bf16.gmra.mrb[0].mxu0 %v520
    %v718 = vpop.f32.mrb[0].mxu0
    %v719 = vadd.f32 %v546, %v718
    %v720 = vpop.f32.mrb[0].mxu0
    %v721 = vpop.f32.mrb[0].mxu0
    %v722 = vadd.f32 %v546, %v721
    %v723 = vpop.f32.mrb[0].mxu0
    %724 = vmatprep.mubr.bf16.mxu0 0
    %725 = vmatmul.mubr.bf16.gmra.mrb[0].mxu0 %v521
    %v726 = vpop.f32.mrb[0].mxu0
    %v727 = vadd.f32 %v546, %v726
    %v728 = vpop.f32.mrb[0].mxu0
    %v729 = vpop.f32.mrb[0].mxu0
    %v730 = vadd.f32 %v546, %v729
    %v731 = vpop.f32.mrb[0].mxu0
    %732 = vmatprep.mubr.bf16.mxu0 0
    %733 = vmatmul.mubr.bf16.gmra.mrb[0].mxu0 %v522
    %v734 = vpop.f32.mrb[0].mxu0
    %v735 = vadd.f32 %v546, %v734
    %v736 = vpop.f32.mrb[0].mxu0
    %v737 = vpop.f32.mrb[0].mxu0
    %v738 = vadd.f32 %v546, %v737
    %v739 = vpop.f32.mrb[0].mxu0
    %740 = vmatprep.mubr.bf16.mxu0 0
    %741 = vmatmul.mubr.bf16.gmra.mrb[0].mxu0 %v523
    %v742 = vpop.f32.mrb[0].mxu0
    %v743 = vadd.f32 %v546, %v742
    %v744 = vpop.f32.mrb[0].mxu0
    %v745 = vpop.f32.mrb[0].mxu0
    %v746 = vadd.f32 %v546, %v745
    %v747 = vpop.f32.mrb[0].mxu0
    %748 = vmatprep.mubr.bf16.mxu0 0
    %749 = vmatmul.mubr.bf16.gmra.mrb[0].mxu0 %v524
    %v750 = vpop.f32.mrb[0].mxu0
    %v751 = vadd.f32 %v546, %v750
    %v752 = vpop.f32.mrb[0].mxu0
    %v753 = vpop.f32.mrb[0].mxu0
    %v754 = vadd.f32 %v546, %v753
    %v755 = vpop.f32.mrb[0].mxu0
    %756 = vdwg.mxu0
    %v757 = vtanh.pop %v631
    %v758 = vtanh.pop %v634
    %v759 = vtanh.pop %v639
    %v760 = vtanh.pop %v642
    %v761 = vtanh.pop %v647
    %v762 = vtanh.pop %v650
    %v763 = vtanh.pop %v655
    %v764 = vtanh.pop %v658
    %v765 = vtanh.pop %v663
    %v766 = vtanh.pop %v666
    %v767 = vtanh.pop %v671
    %v768 = vtanh.pop %v674
    %v769 = vtanh.pop %v679
    %v770 = vtanh.pop %v682
    %v771 = vtanh.pop %v687
    %v772 = vtanh.pop %v690
    %v773 = vtanh.pop %v695
    %v774 = vtanh.pop %v698
    %v775 = vtanh.pop %v703
    %v776 = vtanh.pop %v706
    %v777 = vtanh.pop %v711
    %v778 = vtanh.pop %v714
    %v779 = vtanh.pop %v719
    %v780 = vtanh.pop %v722
    %v781 = vtanh.pop %v727
    %v782 = vtanh.pop %v730
    %v783 = vtanh.pop %v735
    %v784 = vtanh.pop %v738
    %v785 = vtanh.pop %v743
    %v786 = vtanh.pop %v746
    %v787 = vtanh.pop %v751
    %v788 = vtanh.pop %v754
    %v789 = vpack.c.bf16 %v758, %v757
    %v790 = vpack.c.bf16 %v760, %v759
    %v791 = vpack.c.bf16 %v762, %v761
    %v792 = vpack.c.bf16 %v764, %v763
    %v793 = vpack.c.bf16 %v766, %v765
    %v794 = vpack.c.bf16 %v768, %v767
    %v795 = vpack.c.bf16 %v770, %v769
    %v796 = vpack.c.bf16 %v772, %v771
    %v797 = vpack.c.bf16 %v774, %v773
    %v798 = vpack.c.bf16 %v776, %v775
    %v799 = vpack.c.bf16 %v778, %v777
    %v800 = vpack.c.bf16 %v780, %v779
    %v801 = vpack.c.bf16 %v782, %v781
    %v802 = vpack.c.bf16 %v784, %v783
    %v803 = vpack.c.bf16 %v786, %v785
    %v804 = vpack.c.bf16 %v788, %v787
    %v805 = vld [vmem:[#allocation11] sm:$0xf]
    %v806 = vld [vmem:[#allocation11 + $0x4] sm:$0xf]
    %v807 = vld [vmem:[#allocation11 + $0x8] sm:$0xf]
    %v808 = vld [vmem:[#allocation11 + $0xc] sm:$0xf]
    %v809 = vld [vmem:[#allocation11 + $0x10] sm:$0xf]
    %v810 = vld [vmem:[#allocation11 + $0x14] sm:$0xf]
    %v811 = vld [vmem:[#allocation11 + $0x18] sm:$0xf]
    %v812 = vld [vmem:[#allocation11 + $0x1c] sm:$0xf]
    %v813 = vld [vmem:[#allocation11 + $0x20] sm:$0xf]
    %v814 = vld [vmem:[#allocation11 + $0x24] sm:$0xf]
    %v815 = vld [vmem:[#allocation11 + $0x28] sm:$0xf]
    %v816 = vld [vmem:[#allocation11 + $0x2c] sm:$0xf]
    %v817 = vld [vmem:[#allocation11 + $0x30] sm:$0xf]
    %v818 = vld [vmem:[#allocation11 + $0x34] sm:$0xf]
    %v819 = vld [vmem:[#allocation11 + $0x38] sm:$0xf]
    %v820 = vld [vmem:[#allocation11 + $0x3c] sm:$0xf]
    %v821 = vld [vmem:[#allocation13] sm:$0x1]
    %v823 = vlaneseq
    %v824 = vshrl.u32 %v823, 7
    %v825 = vsub.s32 0, %v824
    %v826 = vrot.slane %v821, %v825
    %v844 = vunpack.c.l.b16 %v805
    %v845 = vunpack.c.l.b16 %v806
    %v846 = vunpack.c.l.b16 %v807
    %v847 = vunpack.c.l.b16 %v808
    %v848 = vunpack.c.l.b16 %v809
    %v849 = vunpack.c.l.b16 %v810
    %v850 = vunpack.c.l.b16 %v811
    %v851 = vunpack.c.l.b16 %v812
    %v852 = vunpack.c.l.b16 %v813
    %v853 = vunpack.c.l.b16 %v814
    %v854 = vunpack.c.l.b16 %v815
    %v855 = vunpack.c.l.b16 %v816
    %v856 = vunpack.c.l.b16 %v817
    %v857 = vunpack.c.l.b16 %v818
    %v858 = vunpack.c.l.b16 %v819
    %v859 = vunpack.c.l.b16 %v820
    %v860 = vpack.c.b16 %v845, %v844
    %v861 = vpack.c.b16 %v847, %v846
    %v862 = vpack.c.b16 %v849, %v848
    %v863 = vpack.c.b16 %v851, %v850
    %v864 = vpack.c.b16 %v853, %v852
    %v865 = vpack.c.b16 %v855, %v854
    %v866 = vpack.c.b16 %v857, %v856
    %v867 = vpack.c.b16 %v859, %v858
    %876 = vmatprep.subr.bf16.mxu0 0
    %877 = vmatpush1.bf16.msra.mxu0 %v860
    %878 = vmatprep.subr.bf16.mxu0 0
    %879 = vmatpush1.bf16.msra.mxu0 %v861
    %880 = vmatprep.subr.bf16.mxu0 0
    %881 = vmatpush1.bf16.msra.mxu0 %v862
    %882 = vmatprep.subr.bf16.mxu0 0
    %883 = vmatpush1.bf16.msra.mxu0 %v863
    %884 = vmatprep.subr.bf16.mxu0 0
    %885 = vmatpush1.bf16.msra.mxu0 %v864
    %886 = vmatprep.subr.bf16.mxu0 0
    %887 = vmatpush1.bf16.msra.mxu0 %v865
    %888 = vmatprep.subr.bf16.mxu0 0
    %889 = vmatpush1.bf16.msra.mxu0 %v866
    %890 = vmatprep.subr.bf16.mxu0 0
    %891 = vmatpush1.bf16.msra.mxu0 %v867
    %892 = vmatprep.subr.bf16.mxu0 0
    %893 = vmatpush1.bf16.msra.mxu0 0
    %894 = vmatprep.subr.bf16.mxu0 0
    %895 = vmatpush1.bf16.msra.mxu0 0
    %896 = vmatprep.subr.bf16.mxu0 0
    %897 = vmatpush1.bf16.msra.mxu0 0
    %898 = vmatprep.subr.bf16.mxu0 0
    %899 = vmatpush1.bf16.msra.mxu0 0
    %900 = vmatprep.subr.bf16.mxu0 0
    %901 = vmatpush1.bf16.msra.mxu0 0
    %902 = vmatprep.subr.bf16.mxu0 0
    %903 = vmatpush1.bf16.msra.mxu0 0
    %904 = vmatprep.subr.bf16.mxu0 0
    %905 = vmatpush1.bf16.msra.mxu0 0
    %906 = vmatprep.subr.bf16.mxu0 0
    %907 = vmatpush1.bf16.msra.mxu0 0
    %908 = vmatprep.mubr.bf16.mxu0 0
    %909 = vmatmul.mubr.bf16.gmra.mrb[0].mxu0 %v789
    %v910 = vpop.f32.mrb[0].mxu0
    %v911 = vadd.f32 %v826, %v910
    %v912 = vpop.f32.mrb[0].mxu0
    %v913 = vpop.f32.mrb[0].mxu0
    %v914 = vadd.f32 %v826, %v913
    %v915 = vpop.f32.mrb[0].mxu0
    %916 = vmatprep.mubr.bf16.mxu0 0
    %917 = vmatmul.mubr.bf16.gmra.mrb[0].mxu0 %v790
    %v918 = vpop.f32.mrb[0].mxu0
    %v919 = vadd.f32 %v826, %v918
    %v920 = vpop.f32.mrb[0].mxu0
    %v921 = vpop.f32.mrb[0].mxu0
    %v922 = vadd.f32 %v826, %v921
    %v923 = vpop.f32.mrb[0].mxu0
    %924 = vmatprep.mubr.bf16.mxu0 0
    %925 = vmatmul.mubr.bf16.gmra.mrb[0].mxu0 %v791
    %v926 = vpop.f32.mrb[0].mxu0
    %v927 = vadd.f32 %v826, %v926
    %v928 = vpop.f32.mrb[0].mxu0
    %v929 = vpop.f32.mrb[0].mxu0
    %v930 = vadd.f32 %v826, %v929
    %v931 = vpop.f32.mrb[0].mxu0
    %932 = vmatprep.mubr.bf16.mxu0 0
    %933 = vmatmul.mubr.bf16.gmra.mrb[0].mxu0 %v792
    %v934 = vpop.f32.mrb[0].mxu0
    %v935 = vadd.f32 %v826, %v934
    %v936 = vpop.f32.mrb[0].mxu0
    %v937 = vpop.f32.mrb[0].mxu0
    %v938 = vadd.f32 %v826, %v937
    %v939 = vpop.f32.mrb[0].mxu0
    %940 = vmatprep.mubr.bf16.mxu0 0
    %941 = vmatmul.mubr.bf16.gmra.mrb[0].mxu0 %v793
    %v942 = vpop.f32.mrb[0].mxu0
    %v943 = vadd.f32 %v826, %v942
    %v944 = vpop.f32.mrb[0].mxu0
    %v945 = vpop.f32.mrb[0].mxu0
    %v946 = vadd.f32 %v826, %v945
    %v947 = vpop.f32.mrb[0].mxu0
    %948 = vmatprep.mubr.bf16.mxu0 0
    %949 = vmatmul.mubr.bf16.gmra.mrb[0].mxu0 %v794
    %v950 = vpop.f32.mrb[0].mxu0
    %v951 = vadd.f32 %v826, %v950
    %v952 = vpop.f32.mrb[0].mxu0
    %v953 = vpop.f32.mrb[0].mxu0
    %v954 = vadd.f32 %v826, %v953
    %v955 = vpop.f32.mrb[0].mxu0
    %956 = vmatprep.mubr.bf16.mxu0 0
    %957 = vmatmul.mubr.bf16.gmra.mrb[0].mxu0 %v795
    %v958 = vpop.f32.mrb[0].mxu0
    %v959 = vadd.f32 %v826, %v958
    %v960 = vpop.f32.mrb[0].mxu0
    %v961 = vpop.f32.mrb[0].mxu0
    %v962 = vadd.f32 %v826, %v961
    %v963 = vpop.f32.mrb[0].mxu0
    %964 = vmatprep.mubr.bf16.mxu0 0
    %965 = vmatmul.mubr.bf16.gmra.mrb[0].mxu0 %v796
    %v966 = vpop.f32.mrb[0].mxu0
    %v967 = vadd.f32 %v826, %v966
    %v968 = vpop.f32.mrb[0].mxu0
    %v969 = vpop.f32.mrb[0].mxu0
    %v970 = vadd.f32 %v826, %v969
    %v971 = vpop.f32.mrb[0].mxu0
    %972 = vmatprep.mubr.bf16.mxu0 0
    %973 = vmatmul.mubr.bf16.gmra.mrb[0].mxu0 %v797
    %v974 = vpop.f32.mrb[0].mxu0
    %v975 = vadd.f32 %v826, %v974
    %v976 = vpop.f32.mrb[0].mxu0
    %v977 = vpop.f32.mrb[0].mxu0
    %v978 = vadd.f32 %v826, %v977
    %v979 = vpop.f32.mrb[0].mxu0
    %980 = vmatprep.mubr.bf16.mxu0 0
    %981 = vmatmul.mubr.bf16.gmra.mrb[0].mxu0 %v798
    %v982 = vpop.f32.mrb[0].mxu0
    %v983 = vadd.f32 %v826, %v982
    %v984 = vpop.f32.mrb[0].mxu0
    %v985 = vpop.f32.mrb[0].mxu0
    %v986 = vadd.f32 %v826, %v985
    %v987 = vpop.f32.mrb[0].mxu0
    %988 = vmatprep.mubr.bf16.mxu0 0
    %989 = vmatmul.mubr.bf16.gmra.mrb[0].mxu0 %v799
    %v990 = vpop.f32.mrb[0].mxu0
    %v991 = vadd.f32 %v826, %v990
    %v992 = vpop.f32.mrb[0].mxu0
    %v993 = vpop.f32.mrb[0].mxu0
    %v994 = vadd.f32 %v826, %v993
    %v995 = vpop.f32.mrb[0].mxu0
    %996 = vmatprep.mubr.bf16.mxu0 0
    %997 = vmatmul.mubr.bf16.gmra.mrb[0].mxu0 %v800
    %v998 = vpop.f32.mrb[0].mxu0
    %v999 = vadd.f32 %v826, %v998
    %v1000 = vpop.f32.mrb[0].mxu0
    %v1001 = vpop.f32.mrb[0].mxu0
    %v1002 = vadd.f32 %v826, %v1001
    %v1003 = vpop.f32.mrb[0].mxu0
    %1004 = vmatprep.mubr.bf16.mxu0 0
    %1005 = vmatmul.mubr.bf16.gmra.mrb[0].mxu0 %v801
    %v1006 = vpop.f32.mrb[0].mxu0
    %v1007 = vadd.f32 %v826, %v1006
    %v1008 = vpop.f32.mrb[0].mxu0
    %v1009 = vpop.f32.mrb[0].mxu0
    %v1010 = vadd.f32 %v826, %v1009
    %v1011 = vpop.f32.mrb[0].mxu0
    %1012 = vmatprep.mubr.bf16.mxu0 0
    %1013 = vmatmul.mubr.bf16.gmra.mrb[0].mxu0 %v802
    %v1014 = vpop.f32.mrb[0].mxu0
    %v1015 = vadd.f32 %v826, %v1014
    %v1016 = vpop.f32.mrb[0].mxu0
    %v1017 = vpop.f32.mrb[0].mxu0
    %v1018 = vadd.f32 %v826, %v1017
    %v1019 = vpop.f32.mrb[0].mxu0
    %1020 = vmatprep.mubr.bf16.mxu0 0
    %1021 = vmatmul.mubr.bf16.gmra.mrb[0].mxu0 %v803
    %v1022 = vpop.f32.mrb[0].mxu0
    %v1023 = vadd.f32 %v826, %v1022
    %v1024 = vpop.f32.mrb[0].mxu0
    %v1025 = vpop.f32.mrb[0].mxu0
    %v1026 = vadd.f32 %v826, %v1025
    %v1027 = vpop.f32.mrb[0].mxu0
    %1028 = vmatprep.mubr.bf16.mxu0 0
    %1029 = vmatmul.mubr.bf16.gmra.mrb[0].mxu0 %v804
    %v1030 = vpop.f32.mrb[0].mxu0
    %v1031 = vadd.f32 %v826, %v1030
    %v1032 = vpop.f32.mrb[0].mxu0
    %v1033 = vpop.f32.mrb[0].mxu0
    %v1034 = vadd.f32 %v826, %v1033
    %v1035 = vpop.f32.mrb[0].mxu0
    %1036 = vdwg.mxu0
    %v1037 = vtanh.pop %v911
    %v1038 = vtanh.pop %v914
    %v1039 = vtanh.pop %v919
    %v1040 = vtanh.pop %v922
    %v1041 = vtanh.pop %v927
    %v1042 = vtanh.pop %v930
    %v1043 = vtanh.pop %v935
    %v1044 = vtanh.pop %v938
    %v1045 = vtanh.pop %v943
    %v1046 = vtanh.pop %v946
    %v1047 = vtanh.pop %v951
    %v1048 = vtanh.pop %v954
    %v1049 = vtanh.pop %v959
    %v1050 = vtanh.pop %v962
    %v1051 = vtanh.pop %v967
    %v1052 = vtanh.pop %v970
    %v1053 = vtanh.pop %v975
    %v1054 = vtanh.pop %v978
    %v1055 = vtanh.pop %v983
    %v1056 = vtanh.pop %v986
    %v1057 = vtanh.pop %v991
    %v1058 = vtanh.pop %v994
    %v1059 = vtanh.pop %v999
    %v1060 = vtanh.pop %v1002
    %v1061 = vtanh.pop %v1007
    %v1062 = vtanh.pop %v1010
    %v1063 = vtanh.pop %v1015
    %v1064 = vtanh.pop %v1018
    %v1065 = vtanh.pop %v1023
    %v1066 = vtanh.pop %v1026
    %v1067 = vtanh.pop %v1031
    %v1068 = vtanh.pop %v1034
    %1069 = vst [vmem:[#allocation14] sm:$0xff] %v1037
    %1070 = vst [vmem:[#allocation14 + $0x8] sm:$0xff] %v1038
    %1071 = vst [vmem:[#allocation14 + $0x10] sm:$0xff] %v1039
    %1072 = vst [vmem:[#allocation14 + $0x18] sm:$0xff] %v1040
    %1073 = vst [vmem:[#allocation14 + $0x20] sm:$0xff] %v1041
    %1074 = vst [vmem:[#allocation14 + $0x28] sm:$0xff] %v1042
    %1075 = vst [vmem:[#allocation14 + $0x30] sm:$0xff] %v1043
    %1076 = vst [vmem:[#allocation14 + $0x38] sm:$0xff] %v1044
    %1077 = vst [vmem:[#allocation14 + $0x40] sm:$0xff] %v1045
    %1078 = vst [vmem:[#allocation14 + $0x48] sm:$0xff] %v1046
    %1079 = vst [vmem:[#allocation14 + $0x50] sm:$0xff] %v1047
    %1080 = vst [vmem:[#allocation14 + $0x58] sm:$0xff] %v1048
    %1081 = vst [vmem:[#allocation14 + $0x60] sm:$0xff] %v1049
    %1082 = vst [vmem:[#allocation14 + $0x68] sm:$0xff] %v1050
    %1083 = vst [vmem:[#allocation14 + $0x70] sm:$0xff] %v1051
    %1084 = vst [vmem:[#allocation14 + $0x78] sm:$0xff] %v1052
    %1085 = vst [vmem:[#allocation14 + $0x80] sm:$0xff] %v1053
    %1086 = vst [vmem:[#allocation14 + $0x88] sm:$0xff] %v1054
    %1087 = vst [vmem:[#allocation14 + $0x90] sm:$0xff] %v1055
    %1088 = vst [vmem:[#allocation14 + $0x98] sm:$0xff] %v1056
    %1089 = vst [vmem:[#allocation14 + $0xa0] sm:$0xff] %v1057
    %1090 = vst [vmem:[#allocation14 + $0xa8] sm:$0xff] %v1058
    %1091 = vst [vmem:[#allocation14 + $0xb0] sm:$0xff] %v1059
    %1092 = vst [vmem:[#allocation14 + $0xb8] sm:$0xff] %v1060
    %1093 = vst [vmem:[#allocation14 + $0xc0] sm:$0xff] %v1061
    %1094 = vst [vmem:[#allocation14 + $0xc8] sm:$0xff] %v1062
    %1095 = vst [vmem:[#allocation14 + $0xd0] sm:$0xff] %v1063
    %1096 = vst [vmem:[#allocation14 + $0xd8] sm:$0xff] %v1064
    %1097 = vst [vmem:[#allocation14 + $0xe0] sm:$0xff] %v1065
    %1098 = vst [vmem:[#allocation14 + $0xe8] sm:$0xff] %v1066
    %1099 = vst [vmem:[#allocation14 + $0xf0] sm:$0xff] %v1067
    %1100 = vst [vmem:[#allocation14 + $0xf8] sm:$0xff] %v1068
    // Predicated region
    $region58: #{tpu_custom_call.1} parent=1 // pred_check
      _
    $region59: #{tpu_custom_call.1} parent=1 // pred_check_branch
      %1102 = sbr.rel (0) target = $region61
    $region60: #{tpu_custom_call.1} parent=1 // pred_region
      %s1104 = ssub.s32 4096, 4096
      %1105 = vsyncadd [#allocation4], %s1104
      %s1106 = sshll.u32 [#allocation14], 4
      %s1107 = int_to_ptr.vmem [resolvable:$true] %s1106
      %1112 = dma.vmem_to_hbm [thread:$0]  %s1107, 4096, %s7, [#allocation4], 128, 128, 8
    $region61: #{tpu_custom_call.1} parent=1 // pred_fallthru
      _
    // Predicated region
    $region62: #{tpu_custom_call.1} parent=1 // pred_check
      _
    $region63: #{tpu_custom_call.1} parent=1 // pred_check_branch
      %1114 = sbr.rel (0) target = $region65
    $region64: #{tpu_custom_call.1} parent=1 // pred_region
      %1115 = dma.done [#allocation4], 4096
    $region65: #{tpu_custom_call.1} parent=1 // pred_fallthru
      _
    %1116 = vsyncpa [#allocation3], 1
    %1117 = vsyncpa [#allocation6], 1
    %1118 = vsyncpa [#allocation9], 1
    %1119 = vsyncpa [#allocation12], 1
    %1120 = vsyncpa [#allocation4], 1

</llo_original>
